<compile_context>
chip_gen: v6e
topology: v6e:2x2x1
jax: 0.10.0
libtpu: 0.0.40
codegen_flags: <defaults>
</compile_context>

<pallas_src>
import jax
import jax.numpy as jnp
from jax.experimental import pallas as pl
from jax.experimental.pallas import tpu as pltpu

INPUT_DIM = 32            # input_dim
L = 2                     # number of hidden (Linear+ReLU) layers
H1 = INPUT_DIM // 2       # 16
H2 = INPUT_DIM // 4       # 8
OUT_DIM = 8               # output_dim
TN_MAX = 16384            # max rows per grid step (bandwidth-bound: big tiles win)


# ------------------------------- fused MLP readout kernel -------------------------------
def _mlp_readout_kernel(x_ref, w1_ref, b1_ref, w2_ref, b2_ref, w3_ref, b3_ref, o_ref):
    # x_ref: (TN, D)   w{i}_ref: (in, out) pre-transposed   b{i}_ref: (1, out) f32
    h = jnp.dot(x_ref[...], w1_ref[...], preferred_element_type=jnp.float32) + b1_ref[...]
    h = jnp.maximum(h, 0.0)                                    # ReLU
    h = jnp.dot(h, w2_ref[...], preferred_element_type=jnp.float32) + b2_ref[...]
    h = jnp.maximum(h, 0.0)                                    # ReLU
    y = jnp.dot(h, w3_ref[...], preferred_element_type=jnp.float32) + b3_ref[...]
    o_ref[...] = y.astype(o_ref.dtype)


def _pick_tn(n_rows):
    """Largest tile (multiple of 8, <= TN_MAX) that still gives >=2 grid steps."""
    for tn in (16384, 8192, 4096, 2048, 1024, 512, 256, 128):
        if n_rows >= 2 * tn:
            return tn
    return max(8, min(128, ((n_rows + 7) // 8) * 8))


def mlp_readout(x, prepped, *, tn=None):
    """x: (N, INPUT_DIM) -> (N, OUT_DIM).  `prepped` = prepare_params(params)."""
    N, D = x.shape
    assert D == INPUT_DIM
    if tn is None:
        tn = _pick_tn(N)
    grid = (pl.cdiv(N, tn),)                       # ragged tail handled by Pallas masking

    w1t, b1, w2t, b2, w3t, b3 = prepped
    const = lambda shape: pl.BlockSpec(shape, lambda i: (0, 0))   # VMEM-resident weights

    flops = 2 * N * (D * H1 + H1 * H2 + H2 * OUT_DIM)
    bytes_accessed = (N * (D + OUT_DIM)) * x.dtype.itemsize \
        + (D * H1 + H1 * H2 + H2 * OUT_DIM + H1 + H2 + OUT_DIM) * 4

    return pl.pallas_call(
        _mlp_readout_kernel,
        out_shape=jax.ShapeDtypeStruct((N, OUT_DIM), x.dtype),
        grid=grid,
        in_specs=[
            pl.BlockSpec((tn, D), lambda i: (i, 0)),   # x row tile
            const((D, H1)), const((1, H1)),
            const((H1, H2)), const((1, H2)),
            const((H2, OUT_DIM)), const((1, OUT_DIM)),
        ],
        out_specs=pl.BlockSpec((tn, OUT_DIM), lambda i: (i, 0)),
        compiler_params=pltpu.CompilerParams(dimension_semantics=("parallel",)),
        cost_estimate=pl.CostEstimate(flops=flops, transcendentals=0,
                                      bytes_accessed=bytes_accessed),
    )(x, w1t, b1, w2t, b2, w3t, b3)


# ------------------------------------- params / reference -------------------------------------
def make_params(key):
    ks = jax.random.split(key, 6)
    # PyTorch Linear stores W as (out_features, in_features); y = x @ W.T + b
    return {
        "w1": jax.random.normal(ks[0], (H1, INPUT_DIM), jnp.float32) * 0.1,
        "b1": jax.random.normal(ks[1], (H1,), jnp.float32) * 0.1,
        "w2": jax.random.normal(ks[2], (H2, H1), jnp.float32) * 0.1,
        "b2": jax.random.normal(ks[3], (H2,), jnp.float32) * 0.1,
        "w3": jax.random.normal(ks[4], (OUT_DIM, H2), jnp.float32) * 0.1,
        "b3": jax.random.normal(ks[5], (OUT_DIM,), jnp.float32) * 0.1,
    }


def prepare_params(params):
    """One-time weight prep (hoisted out of the per-call hot path)."""
    return (
        jnp.asarray(params["w1"]).T,              # (D,  H1)
        jnp.asarray(params["b1"], jnp.float32)[None, :],
        jnp.asarray(params["w2"]).T,              # (H1, H2)
        jnp.asarray(params["b2"], jnp.float32)[None, :],
        jnp.asarray(params["w3"]).T,              # (H2, OUT_DIM)
        jnp.asarray(params["b3"], jnp.float32)[None, :],
    )


def reference(x, params):
    y = x
    y = jnp.maximum(y @ params["w1"].T + params["b1"], 0.0)
    y = jnp.maximum(y @ params["w2"].T + params["b2"], 0.0)
    y = y @ params["w3"].T + params["b3"]
    return y


if __name__ == "__main__":
    key = jax.random.PRNGKey(0)
    k_x, k_x2, k_p = jax.random.split(key, 3)

    params = make_params(k_p)
    prepped = prepare_params(params)   # hoisted: done once, reused across calls

    # Ragged N (not a multiple of the 128-row tile) exercises the masked final block.
    N = 300
    x = jax.random.normal(k_x, (N, INPUT_DIM), jnp.float32)
    out = jax.block_until_ready(mlp_readout(x, prepped))
    ref = reference(x, params)
    assert out.shape == (N, OUT_DIM)
    assert bool(jnp.allclose(out, ref, atol=1e-4, rtol=1e-4)), "mismatch (ragged N)"

    # Even N, 2 grid steps (keeps both v7x TensorCores busy via "parallel" semantics).
    N2 = 256
    x2 = jax.random.normal(k_x2, (N2, INPUT_DIM), jnp.float32)
    out2 = jax.block_until_ready(mlp_readout(x2, prepped))
    ref2 = reference(x2, params)
    assert out2.shape == (N2, OUT_DIM)
    assert bool(jnp.allclose(out2, ref2, atol=1e-4, rtol=1e-4)), "mismatch (even N)"

    print("KERNEL_OK")
</pallas_src>

<mosaic_0001>
module attributes {stable_mosaic.version = 11 : i64} {
  func.func @_mlp_readout_kernel(%arg0: i32, %arg1: memref<128x32xf32, #tpu.memory_space<vmem>>, %arg2: memref<32x16xf32, #tpu.memory_space<vmem>>, %arg3: memref<1x16xf32, #tpu.memory_space<vmem>>, %arg4: memref<16x8xf32, #tpu.memory_space<vmem>>, %arg5: memref<1x8xf32, #tpu.memory_space<vmem>>, %arg6: memref<8x8xf32, #tpu.memory_space<vmem>>, %arg7: memref<1x8xf32, #tpu.memory_space<vmem>>, %arg8: memref<128x8xf32, #tpu.memory_space<vmem>>) attributes {dimension_semantics = [#tpu.dimension_semantics<parallel>], iteration_bounds = array<i64: 3>, scalar_prefetch = 0 : i64, scratch_operands = 0 : i64, tpu.core_type = #tpu.core_type<tc>, window_params = [{transform_indices = @transform_0, window_bounds = array<i64: 128, 32>}, {pipeline_mode = #tpu.pipeline_mode<synchronous>, transform_indices = @transform_1, window_bounds = array<i64: 32, 16>}, {pipeline_mode = #tpu.pipeline_mode<synchronous>, transform_indices = @transform_2, window_bounds = array<i64: 1, 16>}, {pipeline_mode = #tpu.pipeline_mode<synchronous>, transform_indices = @transform_3, window_bounds = array<i64: 16, 8>}, {pipeline_mode = #tpu.pipeline_mode<synchronous>, transform_indices = @transform_4, window_bounds = array<i64: 1, 8>}, {pipeline_mode = #tpu.pipeline_mode<synchronous>, transform_indices = @transform_5, window_bounds = array<i64: 8, 8>}, {pipeline_mode = #tpu.pipeline_mode<synchronous>, transform_indices = @transform_6, window_bounds = array<i64: 1, 8>}, {transform_indices = @transform_7, window_bounds = array<i64: 128, 8>}]} {
    %c0 = arith.constant 0 : index
    %c0_0 = arith.constant 0 : index
    %0 = vector.load %arg1[%c0, %c0_0] : memref<128x32xf32, #tpu.memory_space<vmem>>, vector<128x32xf32>
    %c0_1 = arith.constant 0 : index
    %c0_2 = arith.constant 0 : index
    %1 = vector.load %arg2[%c0_1, %c0_2] : memref<32x16xf32, #tpu.memory_space<vmem>>, vector<32x16xf32>
    %cst = arith.constant dense<0.000000e+00> : vector<128x16xf32>
    %2 = tpu.matmul %0, %1, %cst {dimension_numbers = #tpu.dot_dimension_numbers<[1], [0], [0], [1], [0, 0, 1, 1], [], []>} : vector<128x32xf32>, vector<32x16xf32>, vector<128x16xf32> -> vector<128x16xf32>
    %c0_3 = arith.constant 0 : index
    %c0_4 = arith.constant 0 : index
    %3 = vector.load %arg3[%c0_3, %c0_4] : memref<1x16xf32, #tpu.memory_space<vmem>>, vector<1x16xf32>
    %4 = vector.broadcast %3 : vector<1x16xf32> to vector<128x16xf32>
    %5 = arith.addf %2, %4 : vector<128x16xf32>
    %cst_5 = arith.constant 0.000000e+00 : f32
    %6 = vector.broadcast %cst_5 : f32 to vector<128x16xf32>
    %7 = arith.maximumf %5, %6 : vector<128x16xf32>
    %c0_6 = arith.constant 0 : index
    %c0_7 = arith.constant 0 : index
    %8 = vector.load %arg4[%c0_6, %c0_7] : memref<16x8xf32, #tpu.memory_space<vmem>>, vector<16x8xf32>
    %cst_8 = arith.constant dense<0.000000e+00> : vector<128x8xf32>
    %9 = tpu.matmul %7, %8, %cst_8 {dimension_numbers = #tpu.dot_dimension_numbers<[1], [0], [0], [1], [0, 0, 1, 1], [], []>} : vector<128x16xf32>, vector<16x8xf32>, vector<128x8xf32> -> vector<128x8xf32>
    %c0_9 = arith.constant 0 : index
    %c0_10 = arith.constant 0 : index
    %10 = vector.load %arg5[%c0_9, %c0_10] : memref<1x8xf32, #tpu.memory_space<vmem>>, vector<1x8xf32>
    %11 = vector.broadcast %10 : vector<1x8xf32> to vector<128x8xf32>
    %12 = arith.addf %9, %11 : vector<128x8xf32>
    %cst_11 = arith.constant 0.000000e+00 : f32
    %13 = vector.broadcast %cst_11 : f32 to vector<128x8xf32>
    %14 = arith.maximumf %12, %13 : vector<128x8xf32>
    %c0_12 = arith.constant 0 : index
    %c0_13 = arith.constant 0 : index
    %15 = vector.load %arg6[%c0_12, %c0_13] : memref<8x8xf32, #tpu.memory_space<vmem>>, vector<8x8xf32>
    %cst_14 = arith.constant dense<0.000000e+00> : vector<128x8xf32>
    %16 = tpu.matmul %14, %15, %cst_14 {dimension_numbers = #tpu.dot_dimension_numbers<[1], [0], [0], [1], [0, 0, 1, 1], [], []>} : vector<128x8xf32>, vector<8x8xf32>, vector<128x8xf32> -> vector<128x8xf32>
    %c0_15 = arith.constant 0 : index
    %c0_16 = arith.constant 0 : index
    %17 = vector.load %arg7[%c0_15, %c0_16] : memref<1x8xf32, #tpu.memory_space<vmem>>, vector<1x8xf32>
    %18 = vector.broadcast %17 : vector<1x8xf32> to vector<128x8xf32>
    %19 = arith.addf %16, %18 : vector<128x8xf32>
    %c0_17 = arith.constant 0 : index
    %c0_18 = arith.constant 0 : index
    %20 = vector.load %arg8[%c0_17, %c0_18] : memref<128x8xf32, #tpu.memory_space<vmem>>, vector<128x8xf32>
    tpu.vector_store %arg8[%c0_17, %c0_18], %19 {strides = array<i32>} : memref<128x8xf32, #tpu.memory_space<vmem>>, vector<128x8xf32>,
    return
  }
  func.func @transform_0(%arg0: i32) -> (i32, i32) {
    %c0_i32 = arith.constant 0 : i32
    %c0_i32_0 = arith.constant 0 : i32
    return %arg0, %c0_i32 : i32, i32
  }
  func.func @transform_1(%arg0: i32) -> (i32, i32) {
    %c0_i32 = arith.constant 0 : i32
    %c0_i32_0 = arith.constant 0 : i32
    %c0_i32_1 = arith.constant 0 : i32
    return %c0_i32, %c0_i32_0 : i32, i32
  }
  func.func @transform_2(%arg0: i32) -> (i32, i32) {
    %c0_i32 = arith.constant 0 : i32
    %c0_i32_0 = arith.constant 0 : i32
    %c0_i32_1 = arith.constant 0 : i32
    return %c0_i32, %c0_i32_0 : i32, i32
  }
  func.func @transform_3(%arg0: i32) -> (i32, i32) {
    %c0_i32 = arith.constant 0 : i32
    %c0_i32_0 = arith.constant 0 : i32
    %c0_i32_1 = arith.constant 0 : i32
    return %c0_i32, %c0_i32_0 : i32, i32
  }
  func.func @transform_4(%arg0: i32) -> (i32, i32) {
    %c0_i32 = arith.constant 0 : i32
    %c0_i32_0 = arith.constant 0 : i32
    %c0_i32_1 = arith.constant 0 : i32
    return %c0_i32, %c0_i32_0 : i32, i32
  }
  func.func @transform_5(%arg0: i32) -> (i32, i32) {
    %c0_i32 = arith.constant 0 : i32
    %c0_i32_0 = arith.constant 0 : i32
    %c0_i32_1 = arith.constant 0 : i32
    return %c0_i32, %c0_i32_0 : i32, i32
  }
  func.func @transform_6(%arg0: i32) -> (i32, i32) {
    %c0_i32 = arith.constant 0 : i32
    %c0_i32_0 = arith.constant 0 : i32
    %c0_i32_1 = arith.constant 0 : i32
    return %c0_i32, %c0_i32_0 : i32, i32
  }
  func.func @transform_7(%arg0: i32) -> (i32, i32) {
    %c0_i32 = arith.constant 0 : i32
    %c0_i32_0 = arith.constant 0 : i32
    return %arg0, %c0_i32 : i32, i32
  }
}

</mosaic_0001>

<llo_original>
// kernel: tpu_custom_call.1
$region0: #{tpu_custom_call.1}
  #allocation0 [shape = 'u32[]', space=smem, size = 0x4, offset = 0x4, fixed_abs, tag = 'smem constant byte address 0x4 - core index']
  #allocation1 [shape = 'u32[144,128]{1,0:T(1,128)}', space=vmem, size = 0x12000, scoped, tag = 'internal scratch']
  %s0 = inlined_call_operand.vmem [shape: f32[300,32], index: 0, kind: input, shape index: {}]
  %s1 = inlined_call_operand.vmem [shape: f32[32,16], index: 1, kind: input, shape index: {}]
  %s2 = inlined_call_operand.vmem [shape: f32[1,16], index: 2, kind: input, shape index: {}]
  %s3 = inlined_call_operand.vmem [shape: f32[16,8], index: 3, kind: input, shape index: {}]
  %s4 = inlined_call_operand.vmem [shape: f32[1,8], index: 4, kind: input, shape index: {}]
  %s5 = inlined_call_operand.vmem [shape: f32[8,8], index: 5, kind: input, shape index: {}]
  %s6 = inlined_call_operand.vmem [shape: f32[1,8], index: 6, kind: input, shape index: {}]
  %s7 = inlined_call_operand.vmem [shape: f32[300,8], index: 7, kind: output, shape index: {}]
  %s8 = sld [smem:[#allocation0]]
  $region109: #{tpu_custom_call.1} parent=0
    _
  %s10 = ssub.s32 1, %s8
  %s11 = scalar_select 0, %s10, %s8
  $region1: #{tpu_custom_call.1} parent=0
    #allocation2 [shape = 'u8[131072]{0}', space=vmem, size = 0x20000, scoped, tag = 'output window, operand 0']
    loop: start=0, step=1, limit=5
    $region2: #{tpu_custom_call.1} parent=1 // loop_pre_header
      _
    $region3: #{tpu_custom_call.1} parent=1 // loop_header
      %s13 = sphi 0, %s17
      %p14 = scmp.ge.s32.totalorder %s13, 5
      %s23 = sphi 0, %s25
      %s26 = sphi 0, %s23
      %s27 = sphi 0, %s26
      %s43 = sphi 0, %s27
      %s47 = sphi 0, %s47
      %s49 = sphi 0, %s47
      %s50 = sphi 0, %s49
      %s64 = sphi 0, %s50
      %s68 = sphi 0, %s68
      %s70 = sphi 0, %s68
      %s71 = sphi 0, %s70
      %s85 = sphi 0, %s71
      %s89 = sphi 0, %s89
      %s91 = sphi 0, %s89
      %s92 = sphi 0, %s91
      %s106 = sphi 0, %s92
      %s110 = sphi 0, %s110
      %s112 = sphi 0, %s110
      %s113 = sphi 0, %s112
      %s127 = sphi 0, %s113
      %s131 = sphi 0, %s131
      %s133 = sphi 0, %s131
      %s134 = sphi 0, %s133
      %s148 = sphi 0, %s134
      %s152 = sphi 0, %s152
      %s154 = sphi 0, %s152
      %s155 = sphi 0, %s154
      %s169 = sphi 0, %s155
      %s175 = sphi 0, %s177
      %s178 = sphi 0, %s175
      %s179 = sphi 0, %s178
      %s195 = sphi 0, %s179
    $region4: #{tpu_custom_call.1} parent=1 // loop_header_branch
      %16 = sbr.rel (%p14) target = $region8
    $region5: #{tpu_custom_call.1} parent=1 // loop_body
      %s18 = ssub.s32 %s13, 1
      %s19 = ssub.s32 %s13, 2
      %s20 = sadd.s32 %s13, 1
      %s21 = ssub.s32 %s13, %s20
      %p22 = scmp.eq.s32.totalorder %s21, 0
      %s24 = sadd.s32 %s23, 1
      %s25 = scalar_select %p22, %s23, %s24
      %p28 = pneg %p22
      %p29 = scmp.eq.s32.totalorder %s13, 2
      %p30 = por %p28, %p29
      %p31 = scmp.ne.s32.totalorder %s23, %s26
      %p32 = scmp.eq.s32.totalorder %s13, 0
      %p33 = por %p31, %p32
      %p34 = scmp.ne.s32.totalorder %s23, %s26
      %p35 = scmp.eq.s32.totalorder %s18, 2
      %p36 = por %p34, %p35
      %p37 = scmp.ne.s32.totalorder %s26, %s27
      %p38 = scmp.eq.s32.totalorder %s18, 0
      %p39 = por %p37, %p38
      %p40 = scmp.ne.s32.totalorder %s26, %s27
      %p41 = scmp.eq.s32.totalorder %s19, 2
      %p42 = por %p40, %p41
      %p44 = scmp.ne.s32.totalorder %s27, %s43
      %p45 = scmp.eq.s32.totalorder %s19, 0
      %p46 = por %p44, %p45
      %s48 = sadd.s32 %s47, 1
      %p51 = scmp.eq.s32.totalorder %s13, 2
      %p52 = scmp.ne.s32.totalorder %s47, %s49
      %p53 = scmp.eq.s32.totalorder %s13, 0
      %p54 = por %p52, %p53
      %p55 = scmp.ne.s32.totalorder %s47, %s49
      %p56 = scmp.eq.s32.totalorder %s18, 2
      %p57 = por %p55, %p56
      %p58 = scmp.ne.s32.totalorder %s49, %s50
      %p59 = scmp.eq.s32.totalorder %s18, 0
      %p60 = por %p58, %p59
      %p61 = scmp.ne.s32.totalorder %s49, %s50
      %p62 = scmp.eq.s32.totalorder %s19, 2
      %p63 = por %p61, %p62
      %p65 = scmp.ne.s32.totalorder %s50, %s64
      %p66 = scmp.eq.s32.totalorder %s19, 0
      %p67 = por %p65, %p66
      %s69 = sadd.s32 %s68, 1
      %p72 = scmp.eq.s32.totalorder %s13, 2
      %p73 = scmp.ne.s32.totalorder %s68, %s70
      %p74 = scmp.eq.s32.totalorder %s13, 0
      %p75 = por %p73, %p74
      %p76 = scmp.ne.s32.totalorder %s68, %s70
      %p77 = scmp.eq.s32.totalorder %s18, 2
      %p78 = por %p76, %p77
      %p79 = scmp.ne.s32.totalorder %s70, %s71
      %p80 = scmp.eq.s32.totalorder %s18, 0
      %p81 = por %p79, %p80
      %p82 = scmp.ne.s32.totalorder %s70, %s71
      %p83 = scmp.eq.s32.totalorder %s19, 2
      %p84 = por %p82, %p83
      %p86 = scmp.ne.s32.totalorder %s71, %s85
      %p87 = scmp.eq.s32.totalorder %s19, 0
      %p88 = por %p86, %p87
      %s90 = sadd.s32 %s89, 1
      %p93 = scmp.eq.s32.totalorder %s13, 2
      %p94 = scmp.ne.s32.totalorder %s89, %s91
      %p95 = scmp.eq.s32.totalorder %s13, 0
      %p96 = por %p94, %p95
      %p97 = scmp.ne.s32.totalorder %s89, %s91
      %p98 = scmp.eq.s32.totalorder %s18, 2
      %p99 = por %p97, %p98
      %p100 = scmp.ne.s32.totalorder %s91, %s92
      %p101 = scmp.eq.s32.totalorder %s18, 0
      %p102 = por %p100, %p101
      %p103 = scmp.ne.s32.totalorder %s91, %s92
      %p104 = scmp.eq.s32.totalorder %s19, 2
      %p105 = por %p103, %p104
      %p107 = scmp.ne.s32.totalorder %s92, %s106
      %p108 = scmp.eq.s32.totalorder %s19, 0
      %p109 = por %p107, %p108
      %s111 = sadd.s32 %s110, 1
      %p114 = scmp.eq.s32.totalorder %s13, 2
      %p115 = scmp.ne.s32.totalorder %s110, %s112
      %p116 = scmp.eq.s32.totalorder %s13, 0
      %p117 = por %p115, %p116
      %p118 = scmp.ne.s32.totalorder %s110, %s112
      %p119 = scmp.eq.s32.totalorder %s18, 2
      %p120 = por %p118, %p119
      %p121 = scmp.ne.s32.totalorder %s112, %s113
      %p122 = scmp.eq.s32.totalorder %s18, 0
      %p123 = por %p121, %p122
      %p124 = scmp.ne.s32.totalorder %s112, %s113
      %p125 = scmp.eq.s32.totalorder %s19, 2
      %p126 = por %p124, %p125
      %p128 = scmp.ne.s32.totalorder %s113, %s127
      %p129 = scmp.eq.s32.totalorder %s19, 0
      %p130 = por %p128, %p129
      %s132 = sadd.s32 %s131, 1
      %p135 = scmp.eq.s32.totalorder %s13, 2
      %p136 = scmp.ne.s32.totalorder %s131, %s133
      %p137 = scmp.eq.s32.totalorder %s13, 0
      %p138 = por %p136, %p137
      %p139 = scmp.ne.s32.totalorder %s131, %s133
      %p140 = scmp.eq.s32.totalorder %s18, 2
      %p141 = por %p139, %p140
      %p142 = scmp.ne.s32.totalorder %s133, %s134
      %p143 = scmp.eq.s32.totalorder %s18, 0
      %p144 = por %p142, %p143
      %p145 = scmp.ne.s32.totalorder %s133, %s134
      %p146 = scmp.eq.s32.totalorder %s19, 2
      %p147 = por %p145, %p146
      %p149 = scmp.ne.s32.totalorder %s134, %s148
      %p150 = scmp.eq.s32.totalorder %s19, 0
      %p151 = por %p149, %p150
      %s153 = sadd.s32 %s152, 1
      %p156 = scmp.eq.s32.totalorder %s13, 2
      %p157 = scmp.ne.s32.totalorder %s152, %s154
      %p158 = scmp.eq.s32.totalorder %s13, 0
      %p159 = por %p157, %p158
      %p160 = scmp.ne.s32.totalorder %s152, %s154
      %p161 = scmp.eq.s32.totalorder %s18, 2
      %p162 = por %p160, %p161
      %p163 = scmp.ne.s32.totalorder %s154, %s155
      %p164 = scmp.eq.s32.totalorder %s18, 0
      %p165 = por %p163, %p164
      %p166 = scmp.ne.s32.totalorder %s154, %s155
      %p167 = scmp.eq.s32.totalorder %s19, 2
      %p168 = por %p166, %p167
      %p170 = scmp.ne.s32.totalorder %s155, %s169
      %p171 = scmp.eq.s32.totalorder %s19, 0
      %p172 = por %p170, %p171
      %s173 = ssub.s32 %s13, %s20
      %p174 = scmp.eq.s32.totalorder %s173, 0
      %s176 = sadd.s32 %s175, 1
      %s177 = scalar_select %p174, %s175, %s176
      %p180 = pneg %p174
      %p181 = scmp.eq.s32.totalorder %s13, 2
      %p182 = por %p180, %p181
      %p183 = scmp.ne.s32.totalorder %s175, %s178
      %p184 = scmp.eq.s32.totalorder %s13, 0
      %p185 = por %p183, %p184
      %p186 = scmp.ne.s32.totalorder %s175, %s178
      %p187 = scmp.eq.s32.totalorder %s18, 2
      %p188 = por %p186, %p187
      %p189 = scmp.ne.s32.totalorder %s178, %s179
      %p190 = scmp.eq.s32.totalorder %s18, 0
      %p191 = por %p189, %p190
      %p192 = scmp.ne.s32.totalorder %s178, %s179
      %p193 = scmp.eq.s32.totalorder %s19, 2
      %p194 = por %p192, %p193
      %p196 = scmp.ne.s32.totalorder %s179, %s195
      %p197 = scmp.eq.s32.totalorder %s19, 0
      %p198 = por %p196, %p197
      %p199 = scmp.le.s32.totalorder 1, %s13
      %p200 = scmp.lt.s32.totalorder %s13, 4
      %p201 = pnand %p199, %p200
      %p202 = pneg %p201
      // Predicated region
      $region9: #{tpu_custom_call.1} parent=5 // pred_check
        _
      $region10: #{tpu_custom_call.1} parent=5 // pred_check_branch
        %204 = sbr.rel (%p201) target = $region12
      $region11: #{tpu_custom_call.1} parent=5 // pred_region
        %s205 = ssub.s32 %s13, 1
        // Predicated region
        $region13: #{tpu_custom_call.1} parent=11 // pred_check
          %p206 = pneg %p60
        $region14: #{tpu_custom_call.1} parent=11 // pred_check_branch
          %208 = sbr.rel (%p206) target = $region16
        $region15: #{tpu_custom_call.1} parent=11 // pred_region
          _
        $region16: #{tpu_custom_call.1} parent=11 // pred_fallthru
          _
        // Predicated region
        $region17: #{tpu_custom_call.1} parent=11 // pred_check
          %p209 = pneg %p81
        $region18: #{tpu_custom_call.1} parent=11 // pred_check_branch
          %211 = sbr.rel (%p209) target = $region20
        $region19: #{tpu_custom_call.1} parent=11 // pred_region
          _
        $region20: #{tpu_custom_call.1} parent=11 // pred_fallthru
          _
        // Predicated region
        $region21: #{tpu_custom_call.1} parent=11 // pred_check
          %p212 = pneg %p102
        $region22: #{tpu_custom_call.1} parent=11 // pred_check_branch
          %214 = sbr.rel (%p212) target = $region24
        $region23: #{tpu_custom_call.1} parent=11 // pred_region
          _
        $region24: #{tpu_custom_call.1} parent=11 // pred_fallthru
          _
        // Predicated region
        $region25: #{tpu_custom_call.1} parent=11 // pred_check
          %p215 = pneg %p123
        $region26: #{tpu_custom_call.1} parent=11 // pred_check_branch
          %217 = sbr.rel (%p215) target = $region28
        $region27: #{tpu_custom_call.1} parent=11 // pred_region
          _
        $region28: #{tpu_custom_call.1} parent=11 // pred_fallthru
          _
        // Predicated region
        $region29: #{tpu_custom_call.1} parent=11 // pred_check
          %p218 = pneg %p144
        $region30: #{tpu_custom_call.1} parent=11 // pred_check_branch
          %220 = sbr.rel (%p218) target = $region32
        $region31: #{tpu_custom_call.1} parent=11 // pred_region
          _
        $region32: #{tpu_custom_call.1} parent=11 // pred_fallthru
          _
        // Predicated region
        $region33: #{tpu_custom_call.1} parent=11 // pred_check
          %p221 = pneg %p165
        $region34: #{tpu_custom_call.1} parent=11 // pred_check_branch
          %223 = sbr.rel (%p221) target = $region36
        $region35: #{tpu_custom_call.1} parent=11 // pred_region
          _
        $region36: #{tpu_custom_call.1} parent=11 // pred_fallthru
          _
      $region12: #{tpu_custom_call.1} parent=5 // pred_fallthru
        _
      %p224 = scmp.lt.s32.totalorder %s13, 3
      // Predicated region
      $region37: #{tpu_custom_call.1} parent=5 // pred_check
        %p225 = pneg %p224
      $region38: #{tpu_custom_call.1} parent=5 // pred_check_branch
        %227 = sbr.rel (%p225) target = $region40
      $region39: #{tpu_custom_call.1} parent=5 // pred_region
        // Predicated region
        $region41: #{tpu_custom_call.1} parent=39 // pred_check
          %p228 = pneg %p33
        $region42: #{tpu_custom_call.1} parent=39 // pred_check_branch
          %230 = sbr.rel (%p228) target = $region44
        $region43: #{tpu_custom_call.1} parent=39 // pred_region
          %s231 = smul.u32 16, %s13
          %s232 = ssub.s32 38, %s231
          %p233 = scmp.lt.s32.totalorder %s232, 16
          %s234 = scalar_select %p233, %s232, 16
          %s235 = smul.u32 128, %s234
          %p236 = scmp.lt.s32.totalorder %s231, 37
          %s237 = scalar_select %p236, %s231, 37
          %s238 = smul.addr %s237, 8
          %s239 = scalar_lea.vmem %s0, %s238
          %s240 = smul.u32 16, %s13
          %s241 = ssub.s32 38, %s240
          %p242 = scmp.lt.s32.totalorder %s241, 16
          %s243 = scalar_select %p242, %s241, 16
          %s244 = smul.u32 128, %s243
        $region44: #{tpu_custom_call.1} parent=39 // pred_fallthru
          _
      $region40: #{tpu_custom_call.1} parent=5 // pred_fallthru
        _
      %p245 = scmp.le.s32.totalorder 1, %s13
      %p246 = scmp.lt.s32.totalorder %s13, 4
      %p247 = pnand %p245, %p246
      %p248 = pneg %p247
      // Predicated region
      $region45: #{tpu_custom_call.1} parent=5 // pred_check
        _
      $region46: #{tpu_custom_call.1} parent=5 // pred_check_branch
        %250 = sbr.rel (%p247) target = $region48
      $region47: #{tpu_custom_call.1} parent=5 // pred_region
        %s251 = ssub.s32 %s13, 1
        %s252 = smul.u32 16, %s18
        %s253 = ssub.s32 38, %s252
        %p254 = scmp.lt.s32.totalorder %s253, 16
        %s255 = scalar_select %p254, %s253, 16
        %s256 = smul.u32 128, %s255
        %p257 = scmp.lt.s32.totalorder %s252, 37
        %s258 = scalar_select %p257, %s252, 37
        %s259 = smul.addr %s258, 8
        %s260 = scalar_lea.vmem %s0, %s259
        %p261 = pneg %p39
        %p262 = pneg %p36
        %p263 = pneg %p60
        %p264 = pneg %p57
        %p265 = pneg %p81
        %p266 = pneg %p78
        %p267 = pneg %p102
        %p268 = pneg %p99
        %p269 = pneg %p123
        %p270 = pneg %p120
        %p271 = pneg %p144
        %p272 = pneg %p141
        %p273 = pneg %p165
        %p274 = pneg %p162
        %p275 = pneg %p191
        %p276 = pneg %p188
        %s277 = sand.u32 %s178, 1
        %s278 = sand.u32 %s178, 1
        %s279 = smul.addr %s278, 128
        %s280 = scalar_lea.vmem [#allocation2], %s279
        %s281 = smul.u32 16, %s18
        %s282 = ssub.s32 38, %s281
        %p283 = scmp.lt.s32.totalorder %s282, 16
        %s284 = scalar_select %p283, %s282, 16
        %s285 = smul.u32 128, %s284
        %p286 = scmp.lt.s32.totalorder %s281, 37
        %s287 = scalar_select %p286, %s281, 37
        %s288 = smul.addr %s287, 8
        %s289 = scalar_lea.vmem %s0, %s288
        %s290 = smul.u32 16, %s18
        %s291 = ssub.s32 38, %s290
        %p292 = scmp.lt.s32.totalorder %s291, 16
        %s293 = scalar_select %p292, %s291, 16
        %s294 = smul.u32 128, %s293
        %s295 = smul.u32 16, %s18
        %s296 = ssub.s32 38, %s295
        %p297 = scmp.lt.s32.totalorder %s296, 16
        %s298 = scalar_select %p297, %s296, 16
        %s299 = smul.u32 128, %s298
        %v300 = vld [vmem:[%s289] sm:$0xff]
        %v301 = vld [vmem:[%s289 + $0x8] sm:$0xff]
        %v302 = vld [vmem:[%s289 + $0x10] sm:$0xff]
        %v303 = vld [vmem:[%s289 + $0x18] sm:$0xff]
        %v304 = vld [vmem:[%s289 + $0x20] sm:$0xff]
        %v305 = vld [vmem:[%s289 + $0x28] sm:$0xff]
        %v306 = vld [vmem:[%s289 + $0x30] sm:$0xff]
        %v307 = vld [vmem:[%s289 + $0x38] sm:$0xff]
        %v308 = vld [vmem:[%s289 + $0x40] sm:$0xff]
        %v309 = vld [vmem:[%s289 + $0x48] sm:$0xff]
        %v310 = vld [vmem:[%s289 + $0x50] sm:$0xff]
        %v311 = vld [vmem:[%s289 + $0x58] sm:$0xff]
        %v312 = vld [vmem:[%s289 + $0x60] sm:$0xff]
        %v313 = vld [vmem:[%s289 + $0x68] sm:$0xff]
        %v314 = vld [vmem:[%s289 + $0x70] sm:$0xff]
        %v315 = vld [vmem:[%s289 + $0x78] sm:$0xff]
        %v316 = vld [vmem:[%s1] sm:$0xff]
        %v317 = vld [vmem:[%s1 + $0x8] sm:$0xff]
        %v318 = vld [vmem:[%s1 + $0x10] sm:$0xff]
        %v319 = vld [vmem:[%s1 + $0x18] sm:$0xff]
        %v320 = vld [vmem:[%s2] sm:$0x1]
        %v322 = vlaneseq
        %v323 = vshrl.u32 %v322, 7
        %v324 = vsub.s32 0, %v323
        %v325 = vrot.slane %v320, %v324
        %vm327 = vcmask 261120
        %v329 = vsel %vm327, %v300, 0
        %v332 = vsel %vm327, %v301, 0
        %v335 = vsel %vm327, %v302, 0
        %v338 = vsel %vm327, %v303, 0
        %v341 = vsel %vm327, %v304, 0
        %v344 = vsel %vm327, %v305, 0
        %v347 = vsel %vm327, %v306, 0
        %v350 = vsel %vm327, %v307, 0
        %v353 = vsel %vm327, %v308, 0
        %v356 = vsel %vm327, %v309, 0
        %v359 = vsel %vm327, %v310, 0
        %v362 = vsel %vm327, %v311, 0
        %v365 = vsel %vm327, %v312, 0
        %v368 = vsel %vm327, %v313, 0
        %v371 = vsel %vm327, %v314, 0
        %v374 = vsel %vm327, %v315, 0
        %376 = vmatprep.subr.mxu0 0.0
        %377 = vmatpush1.msra.mxu0 0.0
        %378 = vmatprep.subr.mxu0 0.0
        %379 = vmatpush1.msra.mxu0 0.0
        %380 = vmatprep.subr.mxu0 0.0
        %381 = vmatpush1.msra.mxu0 0.0
        %382 = vmatprep.subr.mxu0 0.0
        %383 = vmatpush1.msra.mxu0 0.0
        %384 = vmatprep.subr.mxu0 0.0
        %385 = vmatpush1.msra.mxu0 0.0
        %386 = vmatprep.subr.mxu0 0.0
        %387 = vmatpush1.msra.mxu0 0.0
        %388 = vmatprep.subr.mxu0 0.0
        %389 = vmatpush1.msra.mxu0 0.0
        %390 = vmatprep.subr.mxu0 0.0
        %391 = vmatpush1.msra.mxu0 0.0
        %392 = vmatprep.subr.mxu0 0.0
        %393 = vmatpush1.msra.mxu0 0.0
        %394 = vmatprep.subr.mxu0 0.0
        %395 = vmatpush1.msra.mxu0 0.0
        %396 = vmatprep.subr.mxu0 0.0
        %397 = vmatpush1.msra.mxu0 0.0
        %398 = vmatprep.subr.mxu0 0.0
        %399 = vmatpush1.msra.mxu0 0.0
        %400 = vmatprep.subr.mxu0 0.0
        %401 = vmatpush1.msra.mxu0 %v319
        %402 = vmatprep.subr.mxu0 0.0
        %403 = vmatpush1.msra.mxu0 %v318
        %404 = vmatprep.subr.mxu0 0.0
        %405 = vmatpush1.msra.mxu0 %v317
        %406 = vmatprep.subr.mxu0 0.0
        %407 = vmatpush1.msra.mxu0 %v316
        %408 = vmatprep.subr.mxu0 0.0
        %409 = vmatpush2.msra.mxu0 0.0
        %410 = vmatprep.subr.mxu0 0.0
        %411 = vmatpush2.msra.mxu0 0.0
        %412 = vmatprep.subr.mxu0 0.0
        %413 = vmatpush2.msra.mxu0 0.0
        %414 = vmatprep.subr.mxu0 0.0
        %415 = vmatpush2.msra.mxu0 0.0
        %416 = vmatprep.subr.mxu0 0.0
        %417 = vmatpush2.msra.mxu0 0.0
        %418 = vmatprep.subr.mxu0 0.0
        %419 = vmatpush2.msra.mxu0 0.0
        %420 = vmatprep.subr.mxu0 0.0
        %421 = vmatpush2.msra.mxu0 0.0
        %422 = vmatprep.subr.mxu0 0.0
        %423 = vmatpush2.msra.mxu0 0.0
        %424 = vmatprep.subr.mxu0 0.0
        %425 = vmatpush2.msra.mxu0 0.0
        %426 = vmatprep.subr.mxu0 0.0
        %427 = vmatpush2.msra.mxu0 0.0
        %428 = vmatprep.subr.mxu0 0.0
        %429 = vmatpush2.msra.mxu0 0.0
        %430 = vmatprep.subr.mxu0 0.0
        %431 = vmatpush2.msra.mxu0 0.0
        %432 = vmatprep.subr.mxu0 0.0
        %433 = vmatpush2.msra.mxu0 0.0
        %434 = vmatprep.subr.mxu0 0.0
        %435 = vmatpush2.msra.mxu0 0.0
        %436 = vmatprep.subr.mxu0 0.0
        %437 = vmatpush2.msra.mxu0 0.0
        %438 = vmatprep.subr.mxu0 0.0
        %439 = vmatpush2.msra.mxu0 0.0
        %440 = vmatprep.mubr.f32.mxu0 0.0
        %441 = vmatmul.mubr.f32.gmra.mxu0 %v329
        %v442 = vpop.f32.mrf.mxu0
        %v443 = vadd.f32 %v325, %v442
        %v444 = vpop.f32.mrf.mxu0
        %445 = vmatprep.mubr.f32.mxu0 0.0
        %446 = vmatmul.mubr.f32.gmra.mxu0 %v332
        %v447 = vpop.f32.mrf.mxu0
        %v448 = vadd.f32 %v325, %v447
        %v449 = vpop.f32.mrf.mxu0
        %450 = vmatprep.mubr.f32.mxu0 0.0
        %451 = vmatmul.mubr.f32.gmra.mxu0 %v335
        %v452 = vpop.f32.mrf.mxu0
        %v453 = vadd.f32 %v325, %v452
        %v454 = vpop.f32.mrf.mxu0
        %455 = vmatprep.mubr.f32.mxu0 0.0
        %456 = vmatmul.mubr.f32.gmra.mxu0 %v338
        %v457 = vpop.f32.mrf.mxu0
        %v458 = vadd.f32 %v325, %v457
        %v459 = vpop.f32.mrf.mxu0
        %460 = vmatprep.mubr.f32.mxu0 0.0
        %461 = vmatmul.mubr.f32.gmra.mxu0 %v341
        %v462 = vpop.f32.mrf.mxu0
        %v463 = vadd.f32 %v325, %v462
        %v464 = vpop.f32.mrf.mxu0
        %465 = vmatprep.mubr.f32.mxu0 0.0
        %466 = vmatmul.mubr.f32.gmra.mxu0 %v344
        %v467 = vpop.f32.mrf.mxu0
        %v468 = vadd.f32 %v325, %v467
        %v469 = vpop.f32.mrf.mxu0
        %470 = vmatprep.mubr.f32.mxu0 0.0
        %471 = vmatmul.mubr.f32.gmra.mxu0 %v347
        %v472 = vpop.f32.mrf.mxu0
        %v473 = vadd.f32 %v325, %v472
        %v474 = vpop.f32.mrf.mxu0
        %475 = vmatprep.mubr.f32.mxu0 0.0
        %476 = vmatmul.mubr.f32.gmra.mxu0 %v350
        %v477 = vpop.f32.mrf.mxu0
        %v478 = vadd.f32 %v325, %v477
        %v479 = vpop.f32.mrf.mxu0
        %480 = vmatprep.mubr.f32.mxu0 0.0
        %481 = vmatmul.mubr.f32.gmra.mxu0 %v353
        %v482 = vpop.f32.mrf.mxu0
        %v483 = vadd.f32 %v325, %v482
        %v484 = vpop.f32.mrf.mxu0
        %485 = vmatprep.mubr.f32.mxu0 0.0
        %486 = vmatmul.mubr.f32.gmra.mxu0 %v356
        %v487 = vpop.f32.mrf.mxu0
        %v488 = vadd.f32 %v325, %v487
        %v489 = vpop.f32.mrf.mxu0
        %490 = vmatprep.mubr.f32.mxu0 0.0
        %491 = vmatmul.mubr.f32.gmra.mxu0 %v359
        %v492 = vpop.f32.mrf.mxu0
        %v493 = vadd.f32 %v325, %v492
        %v494 = vpop.f32.mrf.mxu0
        %495 = vmatprep.mubr.f32.mxu0 0.0
        %496 = vmatmul.mubr.f32.gmra.mxu0 %v362
        %v497 = vpop.f32.mrf.mxu0
        %v498 = vadd.f32 %v325, %v497
        %v499 = vpop.f32.mrf.mxu0
        %500 = vmatprep.mubr.f32.mxu0 0.0
        %501 = vmatmul.mubr.f32.gmra.mxu0 %v365
        %v502 = vpop.f32.mrf.mxu0
        %v503 = vadd.f32 %v325, %v502
        %v504 = vpop.f32.mrf.mxu0
        %505 = vmatprep.mubr.f32.mxu0 0.0
        %506 = vmatmul.mubr.f32.gmra.mxu0 %v368
        %v507 = vpop.f32.mrf.mxu0
        %v508 = vadd.f32 %v325, %v507
        %v509 = vpop.f32.mrf.mxu0
        %510 = vmatprep.mubr.f32.mxu0 0.0
        %511 = vmatmul.mubr.f32.gmra.mxu0 %v371
        %v512 = vpop.f32.mrf.mxu0
        %v513 = vadd.f32 %v325, %v512
        %v514 = vpop.f32.mrf.mxu0
        %515 = vmatprep.mubr.f32.mxu0 0.0
        %516 = vmatmul.mubr.f32.gmra.mxu0 %v374
        %v517 = vpop.f32.mrf.mxu0
        %v518 = vadd.f32 %v325, %v517
        %v519 = vpop.f32.mrf.mxu0
        %520 = vdwg.mxu0
        %v521 = vmax.f32 %v443, 0.0
        %v522 = vmax.f32 %v448, 0.0
        %v523 = vmax.f32 %v453, 0.0
        %v524 = vmax.f32 %v458, 0.0
        %v525 = vmax.f32 %v463, 0.0
        %v526 = vmax.f32 %v468, 0.0
        %v527 = vmax.f32 %v473, 0.0
        %v528 = vmax.f32 %v478, 0.0
        %v529 = vmax.f32 %v483, 0.0
        %v530 = vmax.f32 %v488, 0.0
        %v531 = vmax.f32 %v493, 0.0
        %v532 = vmax.f32 %v498, 0.0
        %v533 = vmax.f32 %v503, 0.0
        %v534 = vmax.f32 %v508, 0.0
        %v535 = vmax.f32 %v513, 0.0
        %v536 = vmax.f32 %v518, 0.0
        %v537 = vld [vmem:[%s3] sm:$0xff]
        %v538 = vld [vmem:[%s3 + $0x8] sm:$0xff]
        %v539 = vld [vmem:[%s4] sm:$0x1]
        %v541 = vlaneseq
        %v542 = vshrl.u32 %v541, 7
        %v543 = vsub.s32 0, %v542
        %v544 = vrot.slane %v539, %v543
        %vm546 = vcmask 130048
        %v548 = vsel %vm546, %v521, 0
        %v551 = vsel %vm546, %v522, 0
        %v554 = vsel %vm546, %v523, 0
        %v557 = vsel %vm546, %v524, 0
        %v560 = vsel %vm546, %v525, 0
        %v563 = vsel %vm546, %v526, 0
        %v566 = vsel %vm546, %v527, 0
        %v569 = vsel %vm546, %v528, 0
        %v572 = vsel %vm546, %v529, 0
        %v575 = vsel %vm546, %v530, 0
        %v578 = vsel %vm546, %v531, 0
        %v581 = vsel %vm546, %v532, 0
        %v584 = vsel %vm546, %v533, 0
        %v587 = vsel %vm546, %v534, 0
        %v590 = vsel %vm546, %v535, 0
        %v593 = vsel %vm546, %v536, 0
        %595 = vmatprep.subr.mxu0 0.0
        %596 = vmatpush1.msra.mxu0 0.0
        %597 = vmatprep.subr.mxu0 0.0
        %598 = vmatpush1.msra.mxu0 0.0
        %599 = vmatprep.subr.mxu0 0.0
        %600 = vmatpush1.msra.mxu0 0.0
        %601 = vmatprep.subr.mxu0 0.0
        %602 = vmatpush1.msra.mxu0 0.0
        %603 = vmatprep.subr.mxu0 0.0
        %604 = vmatpush1.msra.mxu0 0.0
        %605 = vmatprep.subr.mxu0 0.0
        %606 = vmatpush1.msra.mxu0 0.0
        %607 = vmatprep.subr.mxu0 0.0
        %608 = vmatpush1.msra.mxu0 0.0
        %609 = vmatprep.subr.mxu0 0.0
        %610 = vmatpush1.msra.mxu0 0.0
        %611 = vmatprep.subr.mxu0 0.0
        %612 = vmatpush1.msra.mxu0 0.0
        %613 = vmatprep.subr.mxu0 0.0
        %614 = vmatpush1.msra.mxu0 0.0
        %615 = vmatprep.subr.mxu0 0.0
        %616 = vmatpush1.msra.mxu0 0.0
        %617 = vmatprep.subr.mxu0 0.0
        %618 = vmatpush1.msra.mxu0 0.0
        %619 = vmatprep.subr.mxu0 0.0
        %620 = vmatpush1.msra.mxu0 0.0
        %621 = vmatprep.subr.mxu0 0.0
        %622 = vmatpush1.msra.mxu0 0.0
        %623 = vmatprep.subr.mxu0 0.0
        %624 = vmatpush1.msra.mxu0 %v538
        %625 = vmatprep.subr.mxu0 0.0
        %626 = vmatpush1.msra.mxu0 %v537
        %627 = vmatprep.subr.mxu0 0.0
        %628 = vmatpush2.msra.mxu0 0.0
        %629 = vmatprep.subr.mxu0 0.0
        %630 = vmatpush2.msra.mxu0 0.0
        %631 = vmatprep.subr.mxu0 0.0
        %632 = vmatpush2.msra.mxu0 0.0
        %633 = vmatprep.subr.mxu0 0.0
        %634 = vmatpush2.msra.mxu0 0.0
        %635 = vmatprep.subr.mxu0 0.0
        %636 = vmatpush2.msra.mxu0 0.0
        %637 = vmatprep.subr.mxu0 0.0
        %638 = vmatpush2.msra.mxu0 0.0
        %639 = vmatprep.subr.mxu0 0.0
        %640 = vmatpush2.msra.mxu0 0.0
        %641 = vmatprep.subr.mxu0 0.0
        %642 = vmatpush2.msra.mxu0 0.0
        %643 = vmatprep.subr.mxu0 0.0
        %644 = vmatpush2.msra.mxu0 0.0
        %645 = vmatprep.subr.mxu0 0.0
        %646 = vmatpush2.msra.mxu0 0.0
        %647 = vmatprep.subr.mxu0 0.0
        %648 = vmatpush2.msra.mxu0 0.0
        %649 = vmatprep.subr.mxu0 0.0
        %650 = vmatpush2.msra.mxu0 0.0
        %651 = vmatprep.subr.mxu0 0.0
        %652 = vmatpush2.msra.mxu0 0.0
        %653 = vmatprep.subr.mxu0 0.0
        %654 = vmatpush2.msra.mxu0 0.0
        %655 = vmatprep.subr.mxu0 0.0
        %656 = vmatpush2.msra.mxu0 0.0
        %657 = vmatprep.subr.mxu0 0.0
        %658 = vmatpush2.msra.mxu0 0.0
        %659 = vmatprep.mubr.f32.mxu0 0.0
        %660 = vmatmul.mubr.f32.gmra.mxu0 %v548
        %v661 = vpop.f32.mrf.mxu0
        %v662 = vadd.f32 %v544, %v661
        %v663 = vpop.f32.mrf.mxu0
        %664 = vmatprep.mubr.f32.mxu0 0.0
        %665 = vmatmul.mubr.f32.gmra.mxu0 %v551
        %v666 = vpop.f32.mrf.mxu0
        %v667 = vadd.f32 %v544, %v666
        %v668 = vpop.f32.mrf.mxu0
        %669 = vmatprep.mubr.f32.mxu0 0.0
        %670 = vmatmul.mubr.f32.gmra.mxu0 %v554
        %v671 = vpop.f32.mrf.mxu0
        %v672 = vadd.f32 %v544, %v671
        %v673 = vpop.f32.mrf.mxu0
        %674 = vmatprep.mubr.f32.mxu0 0.0
        %675 = vmatmul.mubr.f32.gmra.mxu0 %v557
        %v676 = vpop.f32.mrf.mxu0
        %v677 = vadd.f32 %v544, %v676
        %v678 = vpop.f32.mrf.mxu0
        %679 = vmatprep.mubr.f32.mxu0 0.0
        %680 = vmatmul.mubr.f32.gmra.mxu0 %v560
        %v681 = vpop.f32.mrf.mxu0
        %v682 = vadd.f32 %v544, %v681
        %v683 = vpop.f32.mrf.mxu0
        %684 = vmatprep.mubr.f32.mxu0 0.0
        %685 = vmatmul.mubr.f32.gmra.mxu0 %v563
        %v686 = vpop.f32.mrf.mxu0
        %v687 = vadd.f32 %v544, %v686
        %v688 = vpop.f32.mrf.mxu0
        %689 = vmatprep.mubr.f32.mxu0 0.0
        %690 = vmatmul.mubr.f32.gmra.mxu0 %v566
        %v691 = vpop.f32.mrf.mxu0
        %v692 = vadd.f32 %v544, %v691
        %v693 = vpop.f32.mrf.mxu0
        %694 = vmatprep.mubr.f32.mxu0 0.0
        %695 = vmatmul.mubr.f32.gmra.mxu0 %v569
        %v696 = vpop.f32.mrf.mxu0
        %v697 = vadd.f32 %v544, %v696
        %v698 = vpop.f32.mrf.mxu0
        %699 = vmatprep.mubr.f32.mxu0 0.0
        %700 = vmatmul.mubr.f32.gmra.mxu0 %v572
        %v701 = vpop.f32.mrf.mxu0
        %v702 = vadd.f32 %v544, %v701
        %v703 = vpop.f32.mrf.mxu0
        %704 = vmatprep.mubr.f32.mxu0 0.0
        %705 = vmatmul.mubr.f32.gmra.mxu0 %v575
        %v706 = vpop.f32.mrf.mxu0
        %v707 = vadd.f32 %v544, %v706
        %v708 = vpop.f32.mrf.mxu0
        %709 = vmatprep.mubr.f32.mxu0 0.0
        %710 = vmatmul.mubr.f32.gmra.mxu0 %v578
        %v711 = vpop.f32.mrf.mxu0
        %v712 = vadd.f32 %v544, %v711
        %v713 = vpop.f32.mrf.mxu0
        %714 = vmatprep.mubr.f32.mxu0 0.0
        %715 = vmatmul.mubr.f32.gmra.mxu0 %v581
        %v716 = vpop.f32.mrf.mxu0
        %v717 = vadd.f32 %v544, %v716
        %v718 = vpop.f32.mrf.mxu0
        %719 = vmatprep.mubr.f32.mxu0 0.0
        %720 = vmatmul.mubr.f32.gmra.mxu0 %v584
        %v721 = vpop.f32.mrf.mxu0
        %v722 = vadd.f32 %v544, %v721
        %v723 = vpop.f32.mrf.mxu0
        %724 = vmatprep.mubr.f32.mxu0 0.0
        %725 = vmatmul.mubr.f32.gmra.mxu0 %v587
        %v726 = vpop.f32.mrf.mxu0
        %v727 = vadd.f32 %v544, %v726
        %v728 = vpop.f32.mrf.mxu0
        %729 = vmatprep.mubr.f32.mxu0 0.0
        %730 = vmatmul.mubr.f32.gmra.mxu0 %v590
        %v731 = vpop.f32.mrf.mxu0
        %v732 = vadd.f32 %v544, %v731
        %v733 = vpop.f32.mrf.mxu0
        %734 = vmatprep.mubr.f32.mxu0 0.0
        %735 = vmatmul.mubr.f32.gmra.mxu0 %v593
        %v736 = vpop.f32.mrf.mxu0
        %v737 = vadd.f32 %v544, %v736
        %v738 = vpop.f32.mrf.mxu0
        %739 = vdwg.mxu0
        %v740 = vmax.f32 %v662, 0.0
        %v741 = vmax.f32 %v667, 0.0
        %v742 = vmax.f32 %v672, 0.0
        %v743 = vmax.f32 %v677, 0.0
        %v744 = vmax.f32 %v682, 0.0
        %v745 = vmax.f32 %v687, 0.0
        %v746 = vmax.f32 %v692, 0.0
        %v747 = vmax.f32 %v697, 0.0
        %v748 = vmax.f32 %v702, 0.0
        %v749 = vmax.f32 %v707, 0.0
        %v750 = vmax.f32 %v712, 0.0
        %v751 = vmax.f32 %v717, 0.0
        %v752 = vmax.f32 %v722, 0.0
        %v753 = vmax.f32 %v727, 0.0
        %v754 = vmax.f32 %v732, 0.0
        %v755 = vmax.f32 %v737, 0.0
        %v756 = vld [vmem:[%s5] sm:$0xff]
        %v757 = vld [vmem:[%s6] sm:$0x1]
        %v759 = vlaneseq
        %v760 = vshrl.u32 %v759, 7
        %v761 = vsub.s32 0, %v760
        %v762 = vrot.slane %v757, %v761
        %vm764 = vcmask 64512
        %v766 = vsel %vm764, %v740, 0
        %v769 = vsel %vm764, %v741, 0
        %v772 = vsel %vm764, %v742, 0
        %v775 = vsel %vm764, %v743, 0
        %v778 = vsel %vm764, %v744, 0
        %v781 = vsel %vm764, %v745, 0
        %v784 = vsel %vm764, %v746, 0
        %v787 = vsel %vm764, %v747, 0
        %v790 = vsel %vm764, %v748, 0
        %v793 = vsel %vm764, %v749, 0
        %v796 = vsel %vm764, %v750, 0
        %v799 = vsel %vm764, %v751, 0
        %v802 = vsel %vm764, %v752, 0
        %v805 = vsel %vm764, %v753, 0
        %v808 = vsel %vm764, %v754, 0
        %v811 = vsel %vm764, %v755, 0
        %813 = vmatprep.subr.mxu0 0.0
        %814 = vmatpush1.msra.mxu0 0.0
        %815 = vmatprep.subr.mxu0 0.0
        %816 = vmatpush1.msra.mxu0 0.0
        %817 = vmatprep.subr.mxu0 0.0
        %818 = vmatpush1.msra.mxu0 0.0
        %819 = vmatprep.subr.mxu0 0.0
        %820 = vmatpush1.msra.mxu0 0.0
        %821 = vmatprep.subr.mxu0 0.0
        %822 = vmatpush1.msra.mxu0 0.0
        %823 = vmatprep.subr.mxu0 0.0
        %824 = vmatpush1.msra.mxu0 0.0
        %825 = vmatprep.subr.mxu0 0.0
        %826 = vmatpush1.msra.mxu0 0.0
        %827 = vmatprep.subr.mxu0 0.0
        %828 = vmatpush1.msra.mxu0 0.0
        %829 = vmatprep.subr.mxu0 0.0
        %830 = vmatpush1.msra.mxu0 0.0
        %831 = vmatprep.subr.mxu0 0.0
        %832 = vmatpush1.msra.mxu0 0.0
        %833 = vmatprep.subr.mxu0 0.0
        %834 = vmatpush1.msra.mxu0 0.0
        %835 = vmatprep.subr.mxu0 0.0
        %836 = vmatpush1.msra.mxu0 0.0
        %837 = vmatprep.subr.mxu0 0.0
        %838 = vmatpush1.msra.mxu0 0.0
        %839 = vmatprep.subr.mxu0 0.0
        %840 = vmatpush1.msra.mxu0 0.0
        %841 = vmatprep.subr.mxu0 0.0
        %842 = vmatpush1.msra.mxu0 0.0
        %843 = vmatprep.subr.mxu0 0.0
        %844 = vmatpush1.msra.mxu0 %v756
        %845 = vmatprep.subr.mxu0 0.0
        %846 = vmatpush2.msra.mxu0 0.0
        %847 = vmatprep.subr.mxu0 0.0
        %848 = vmatpush2.msra.mxu0 0.0
        %849 = vmatprep.subr.mxu0 0.0
        %850 = vmatpush2.msra.mxu0 0.0
        %851 = vmatprep.subr.mxu0 0.0
        %852 = vmatpush2.msra.mxu0 0.0
        %853 = vmatprep.subr.mxu0 0.0
        %854 = vmatpush2.msra.mxu0 0.0
        %855 = vmatprep.subr.mxu0 0.0
        %856 = vmatpush2.msra.mxu0 0.0
        %857 = vmatprep.subr.mxu0 0.0
        %858 = vmatpush2.msra.mxu0 0.0
        %859 = vmatprep.subr.mxu0 0.0
        %860 = vmatpush2.msra.mxu0 0.0
        %861 = vmatprep.subr.mxu0 0.0
        %862 = vmatpush2.msra.mxu0 0.0
        %863 = vmatprep.subr.mxu0 0.0
        %864 = vmatpush2.msra.mxu0 0.0
        %865 = vmatprep.subr.mxu0 0.0
        %866 = vmatpush2.msra.mxu0 0.0
        %867 = vmatprep.subr.mxu0 0.0
        %868 = vmatpush2.msra.mxu0 0.0
        %869 = vmatprep.subr.mxu0 0.0
        %870 = vmatpush2.msra.mxu0 0.0
        %871 = vmatprep.subr.mxu0 0.0
        %872 = vmatpush2.msra.mxu0 0.0
        %873 = vmatprep.subr.mxu0 0.0
        %874 = vmatpush2.msra.mxu0 0.0
        %875 = vmatprep.subr.mxu0 0.0
        %876 = vmatpush2.msra.mxu0 0.0
        %877 = vmatprep.mubr.f32.mxu0 0.0
        %878 = vmatmul.mubr.f32.gmra.mxu0 %v766
        %v879 = vpop.f32.mrf.mxu0
        %v880 = vadd.f32 %v762, %v879
        %v881 = vpop.f32.mrf.mxu0
        %882 = vmatprep.mubr.f32.mxu0 0.0
        %883 = vmatmul.mubr.f32.gmra.mxu0 %v769
        %v884 = vpop.f32.mrf.mxu0
        %v885 = vadd.f32 %v762, %v884
        %v886 = vpop.f32.mrf.mxu0
        %887 = vmatprep.mubr.f32.mxu0 0.0
        %888 = vmatmul.mubr.f32.gmra.mxu0 %v772
        %v889 = vpop.f32.mrf.mxu0
        %v890 = vadd.f32 %v762, %v889
        %v891 = vpop.f32.mrf.mxu0
        %892 = vmatprep.mubr.f32.mxu0 0.0
        %893 = vmatmul.mubr.f32.gmra.mxu0 %v775
        %v894 = vpop.f32.mrf.mxu0
        %v895 = vadd.f32 %v762, %v894
        %v896 = vpop.f32.mrf.mxu0
        %897 = vmatprep.mubr.f32.mxu0 0.0
        %898 = vmatmul.mubr.f32.gmra.mxu0 %v778
        %v899 = vpop.f32.mrf.mxu0
        %v900 = vadd.f32 %v762, %v899
        %v901 = vpop.f32.mrf.mxu0
        %902 = vmatprep.mubr.f32.mxu0 0.0
        %903 = vmatmul.mubr.f32.gmra.mxu0 %v781
        %v904 = vpop.f32.mrf.mxu0
        %v905 = vadd.f32 %v762, %v904
        %v906 = vpop.f32.mrf.mxu0
        %907 = vmatprep.mubr.f32.mxu0 0.0
        %908 = vmatmul.mubr.f32.gmra.mxu0 %v784
        %v909 = vpop.f32.mrf.mxu0
        %v910 = vadd.f32 %v762, %v909
        %v911 = vpop.f32.mrf.mxu0
        %912 = vmatprep.mubr.f32.mxu0 0.0
        %913 = vmatmul.mubr.f32.gmra.mxu0 %v787
        %v914 = vpop.f32.mrf.mxu0
        %v915 = vadd.f32 %v762, %v914
        %v916 = vpop.f32.mrf.mxu0
        %917 = vmatprep.mubr.f32.mxu0 0.0
        %918 = vmatmul.mubr.f32.gmra.mxu0 %v790
        %v919 = vpop.f32.mrf.mxu0
        %v920 = vadd.f32 %v762, %v919
        %v921 = vpop.f32.mrf.mxu0
        %922 = vmatprep.mubr.f32.mxu0 0.0
        %923 = vmatmul.mubr.f32.gmra.mxu0 %v793
        %v924 = vpop.f32.mrf.mxu0
        %v925 = vadd.f32 %v762, %v924
        %v926 = vpop.f32.mrf.mxu0
        %927 = vmatprep.mubr.f32.mxu0 0.0
        %928 = vmatmul.mubr.f32.gmra.mxu0 %v796
        %v929 = vpop.f32.mrf.mxu0
        %v930 = vadd.f32 %v762, %v929
        %v931 = vpop.f32.mrf.mxu0
        %932 = vmatprep.mubr.f32.mxu0 0.0
        %933 = vmatmul.mubr.f32.gmra.mxu0 %v799
        %v934 = vpop.f32.mrf.mxu0
        %v935 = vadd.f32 %v762, %v934
        %v936 = vpop.f32.mrf.mxu0
        %937 = vmatprep.mubr.f32.mxu0 0.0
        %938 = vmatmul.mubr.f32.gmra.mxu0 %v802
        %v939 = vpop.f32.mrf.mxu0
        %v940 = vadd.f32 %v762, %v939
        %v941 = vpop.f32.mrf.mxu0
        %942 = vmatprep.mubr.f32.mxu0 0.0
        %943 = vmatmul.mubr.f32.gmra.mxu0 %v805
        %v944 = vpop.f32.mrf.mxu0
        %v945 = vadd.f32 %v762, %v944
        %v946 = vpop.f32.mrf.mxu0
        %947 = vmatprep.mubr.f32.mxu0 0.0
        %948 = vmatmul.mubr.f32.gmra.mxu0 %v808
        %v949 = vpop.f32.mrf.mxu0
        %v950 = vadd.f32 %v762, %v949
        %v951 = vpop.f32.mrf.mxu0
        %952 = vmatprep.mubr.f32.mxu0 0.0
        %953 = vmatmul.mubr.f32.gmra.mxu0 %v811
        %v954 = vpop.f32.mrf.mxu0
        %v955 = vadd.f32 %v762, %v954
        %v956 = vpop.f32.mrf.mxu0
        %957 = vdwg.mxu0
        %958 = vst.msk [vmem:[%s280] sm:$0xff] %vm764, %v880
        %959 = vst.msk [vmem:[%s280 + $0x8] sm:$0xff] %vm764, %v885
        %960 = vst.msk [vmem:[%s280 + $0x10] sm:$0xff] %vm764, %v890
        %961 = vst.msk [vmem:[%s280 + $0x18] sm:$0xff] %vm764, %v895
        %962 = vst.msk [vmem:[%s280 + $0x20] sm:$0xff] %vm764, %v900
        %963 = vst.msk [vmem:[%s280 + $0x28] sm:$0xff] %vm764, %v905
        %964 = vst.msk [vmem:[%s280 + $0x30] sm:$0xff] %vm764, %v910
        %965 = vst.msk [vmem:[%s280 + $0x38] sm:$0xff] %vm764, %v915
        %966 = vst.msk [vmem:[%s280 + $0x40] sm:$0xff] %vm764, %v920
        %967 = vst.msk [vmem:[%s280 + $0x48] sm:$0xff] %vm764, %v925
        %968 = vst.msk [vmem:[%s280 + $0x50] sm:$0xff] %vm764, %v930
        %969 = vst.msk [vmem:[%s280 + $0x58] sm:$0xff] %vm764, %v935
        %970 = vst.msk [vmem:[%s280 + $0x60] sm:$0xff] %vm764, %v940
        %971 = vst.msk [vmem:[%s280 + $0x68] sm:$0xff] %vm764, %v945
        %972 = vst.msk [vmem:[%s280 + $0x70] sm:$0xff] %vm764, %v950
        %973 = vst.msk [vmem:[%s280 + $0x78] sm:$0xff] %vm764, %v955
        %s974 = sand.u32 %s178, 1
        %s975 = sand.u32 %s178, 1
        %s976 = smul.addr %s975, 128
        %s977 = scalar_lea.vmem [#allocation2], %s976
        // Predicated region
        $region49: #{tpu_custom_call.1} parent=47 // pred_check
          %p978 = pneg %p188
        $region50: #{tpu_custom_call.1} parent=47 // pred_check_branch
          %980 = sbr.rel (%p978) target = $region52
        $region51: #{tpu_custom_call.1} parent=47 // pred_region
          %s981 = smul.u32 16, %s18
          %s982 = ssub.s32 38, %s981
          %p983 = scmp.lt.s32.totalorder %s982, 16
          %s984 = scalar_select %p983, %s982, 16
          %s985 = smul.u32 128, %s984
          %p986 = scmp.ne.s32.totalorder 0, %s985
          %s987 = smul.addr %s981, 8
          %s988 = scalar_lea.vmem %s7, %s987
          // Predicated region
          $region53: #{tpu_custom_call.1} parent=51 // pred_check
            %p989 = pneg %p986
          $region54: #{tpu_custom_call.1} parent=51 // pred_check_branch
            %991 = sbr.rel (%p989) target = $region56
          $region55: #{tpu_custom_call.1} parent=51 // pred_region
            // Predicated region
            $region57: #{tpu_custom_call.1} parent=55 // pred_check
              _
            $region58: #{tpu_custom_call.1} parent=55 // pred_check_branch
              %993 = sbr.rel (0) target = $region60
            $region59: #{tpu_custom_call.1} parent=55 // pred_region
              // Predicated region
              $region79: #{tpu_custom_call.1} parent=59 // pred_check
                _
              $region80: #{tpu_custom_call.1} parent=59 // pred_check_branch
                %1073 = sbr.rel (0) target = $region82
              $region81: #{tpu_custom_call.1} parent=59 // pred_region
                %s1074 = sshrl.u32 %s984, 4
                // While loop
                $region83: #{tpu_custom_call.1} parent=81 // loop_pre_header
                  _
                $region84: #{tpu_custom_call.1} parent=81 // loop_header
                  %s1076 = sphi 0, %s1078
                  %p1077 = scmp.ge.s32.totalorder %s1076, %s1074
                  %s1081 = sphi 0, %s1118
                  %s1082 = sphi %s977, %s1121
                  %s1083 = sphi %s988, %s1122
                $region85: #{tpu_custom_call.1} parent=81 // loop_header_branch
                  %1080 = sbr.rel (%p1077) target = $region89
                $region86: #{tpu_custom_call.1} parent=81 // loop_body
                  %v1084 = vld [vmem:[%s1082] sm:$0xff]
                  %1085 = vst [vmem:[%s1083] sm:$0xff] %v1084
                  %v1086 = vld [vmem:[%s1082 + $0x8] sm:$0xff]
                  %1087 = vst [vmem:[%s1083 + $0x8] sm:$0xff] %v1086
                  %v1088 = vld [vmem:[%s1082 + $0x10] sm:$0xff]
                  %1089 = vst [vmem:[%s1083 + $0x10] sm:$0xff] %v1088
                  %v1090 = vld [vmem:[%s1082 + $0x18] sm:$0xff]
                  %1091 = vst [vmem:[%s1083 + $0x18] sm:$0xff] %v1090
                  %v1092 = vld [vmem:[%s1082 + $0x20] sm:$0xff]
                  %1093 = vst [vmem:[%s1083 + $0x20] sm:$0xff] %v1092
                  %v1094 = vld [vmem:[%s1082 + $0x28] sm:$0xff]
                  %1095 = vst [vmem:[%s1083 + $0x28] sm:$0xff] %v1094
                  %v1096 = vld [vmem:[%s1082 + $0x30] sm:$0xff]
                  %1097 = vst [vmem:[%s1083 + $0x30] sm:$0xff] %v1096
                  %v1098 = vld [vmem:[%s1082 + $0x38] sm:$0xff]
                  %1099 = vst [vmem:[%s1083 + $0x38] sm:$0xff] %v1098
                  %v1100 = vld [vmem:[%s1082 + $0x40] sm:$0xff]
                  %1101 = vst [vmem:[%s1083 + $0x40] sm:$0xff] %v1100
                  %v1102 = vld [vmem:[%s1082 + $0x48] sm:$0xff]
                  %1103 = vst [vmem:[%s1083 + $0x48] sm:$0xff] %v1102
                  %v1104 = vld [vmem:[%s1082 + $0x50] sm:$0xff]
                  %1105 = vst [vmem:[%s1083 + $0x50] sm:$0xff] %v1104
                  %v1106 = vld [vmem:[%s1082 + $0x58] sm:$0xff]
                  %1107 = vst [vmem:[%s1083 + $0x58] sm:$0xff] %v1106
                  %v1108 = vld [vmem:[%s1082 + $0x60] sm:$0xff]
                  %1109 = vst [vmem:[%s1083 + $0x60] sm:$0xff] %v1108
                  %v1110 = vld [vmem:[%s1082 + $0x68] sm:$0xff]
                  %1111 = vst [vmem:[%s1083 + $0x68] sm:$0xff] %v1110
                  %v1112 = vld [vmem:[%s1082 + $0x70] sm:$0xff]
                  %1113 = vst [vmem:[%s1083 + $0x70] sm:$0xff] %v1112
                  %v1114 = vld [vmem:[%s1082 + $0x78] sm:$0xff]
                  %1115 = vst [vmem:[%s1083 + $0x78] sm:$0xff] %v1114
                  %s1116 = sadd.s32 1, %s1081
                  %p1117 = scmp.ge.s32.totalorder %s1116, %s1074
                  %s1118 = scalar_select %p1117, 0, %s1116
                  %s1119 = smul.u32 %s1118, 128
                  %s1120 = smul.u32 %s1118, 128
                  %s1121 = scalar_lea.vmem %s977, %s1119 [#allocation2]
                  %s1122 = scalar_lea.vmem %s988, %s1120
                $region87: #{tpu_custom_call.1} parent=81 // loop_footer
                  %s1078 = sadd.s32 %s1076, 1
                $region88: #{tpu_custom_call.1} parent=81 // loop_footer_branch
                  %1075 = sbr.rel target = $region84
                $region89: #{tpu_custom_call.1} parent=81 // loop_exit
                  _
                %s1123 = sshrl.u32 %s984, 4
                %s1124 = sand.u32 %s984, 15
                %s1125 = smul.u32 %s1123, 16
                %s1126 = smul.u32 8, %s1125
                %s1127 = scalar_lea.vmem %s977, %s1126 [#allocation2]
                %s1128 = smul.u32 8, %s1125
                %s1129 = scalar_lea.vmem %s988, %s1128
                // While loop
                $region90: #{tpu_custom_call.1} parent=81 // loop_pre_header
                  _
                $region91: #{tpu_custom_call.1} parent=81 // loop_header
                  %s1131 = sphi 0, %s1133
                  %p1132 = scmp.ge.s32.totalorder %s1131, %s1124
                  %s1136 = sphi 0, %s1143
                  %s1137 = sphi %s1127, %s1146
                  %s1138 = sphi %s1129, %s1147
                $region92: #{tpu_custom_call.1} parent=81 // loop_header_branch
                  %1135 = sbr.rel (%p1132) target = $region96
                $region93: #{tpu_custom_call.1} parent=81 // loop_body
                  %v1139 = vld [vmem:[%s1137] sm:$0xff]
                  %1140 = vst [vmem:[%s1138] sm:$0xff] %v1139
                  %s1141 = sadd.s32 1, %s1136
                  %p1142 = scmp.ge.s32.totalorder %s1141, %s1124
                  %s1143 = scalar_select %p1142, 0, %s1141
                  %s1144 = smul.u32 %s1143, 8
                  %s1145 = smul.u32 %s1143, 8
                  %s1146 = scalar_lea.vmem %s1127, %s1144 [#allocation2]
                  %s1147 = scalar_lea.vmem %s1129, %s1145
                $region94: #{tpu_custom_call.1} parent=81 // loop_footer
                  %s1133 = sadd.s32 %s1131, 1
                $region95: #{tpu_custom_call.1} parent=81 // loop_footer_branch
                  %1130 = sbr.rel target = $region91
                $region96: #{tpu_custom_call.1} parent=81 // loop_exit
                  _
              $region82: #{tpu_custom_call.1} parent=59 // pred_fallthru
                _
              // Predicated region
              $region97: #{tpu_custom_call.1} parent=59 // pred_check
                _
              $region98: #{tpu_custom_call.1} parent=59 // pred_check_branch
                %1149 = sbr.rel target = $region100
              $region99: #{tpu_custom_call.1} parent=59 // pred_region
                _
              $region100: #{tpu_custom_call.1} parent=59 // pred_fallthru
                _
            $region60: #{tpu_custom_call.1} parent=55 // pred_fallthru
              _
            // Predicated region
            $region61: #{tpu_custom_call.1} parent=55 // pred_check
              _
            $region62: #{tpu_custom_call.1} parent=55 // pred_check_branch
              %995 = sbr.rel target = $region64
            $region63: #{tpu_custom_call.1} parent=55 // pred_region
              %s997 = ssub.s32 256, 1
              %s998 = sshrl.u32 %s984, 4
              // While loop
              $region65: #{tpu_custom_call.1} parent=63 // loop_pre_header
                _
              $region66: #{tpu_custom_call.1} parent=63 // loop_header
                %s1000 = sphi 0, %s1002
                %p1001 = scmp.ge.s32.totalorder %s1000, %s998
                %s1005 = sphi 0, %s1042
                %s1006 = sphi %s977, %s1045
                %s1007 = sphi %s988, %s1046
              $region67: #{tpu_custom_call.1} parent=63 // loop_header_branch
                %1004 = sbr.rel (%p1001) target = $region71
              $region68: #{tpu_custom_call.1} parent=63 // loop_body
                %v1008 = vld [vmem:[%s1006] sm:%s997]
                %1009 = vst [vmem:[%s1007] sm:%s997] %v1008
                %v1010 = vld [vmem:[%s1006 + $0x8] sm:%s997]
                %1011 = vst [vmem:[%s1007 + $0x8] sm:%s997] %v1010
                %v1012 = vld [vmem:[%s1006 + $0x10] sm:%s997]
                %1013 = vst [vmem:[%s1007 + $0x10] sm:%s997] %v1012
                %v1014 = vld [vmem:[%s1006 + $0x18] sm:%s997]
                %1015 = vst [vmem:[%s1007 + $0x18] sm:%s997] %v1014
                %v1016 = vld [vmem:[%s1006 + $0x20] sm:%s997]
                %1017 = vst [vmem:[%s1007 + $0x20] sm:%s997] %v1016
                %v1018 = vld [vmem:[%s1006 + $0x28] sm:%s997]
                %1019 = vst [vmem:[%s1007 + $0x28] sm:%s997] %v1018
                %v1020 = vld [vmem:[%s1006 + $0x30] sm:%s997]
                %1021 = vst [vmem:[%s1007 + $0x30] sm:%s997] %v1020
                %v1022 = vld [vmem:[%s1006 + $0x38] sm:%s997]
                %1023 = vst [vmem:[%s1007 + $0x38] sm:%s997] %v1022
                %v1024 = vld [vmem:[%s1006 + $0x40] sm:%s997]
                %1025 = vst [vmem:[%s1007 + $0x40] sm:%s997] %v1024
                %v1026 = vld [vmem:[%s1006 + $0x48] sm:%s997]
                %1027 = vst [vmem:[%s1007 + $0x48] sm:%s997] %v1026
                %v1028 = vld [vmem:[%s1006 + $0x50] sm:%s997]
                %1029 = vst [vmem:[%s1007 + $0x50] sm:%s997] %v1028
                %v1030 = vld [vmem:[%s1006 + $0x58] sm:%s997]
                %1031 = vst [vmem:[%s1007 + $0x58] sm:%s997] %v1030
                %v1032 = vld [vmem:[%s1006 + $0x60] sm:%s997]
                %1033 = vst [vmem:[%s1007 + $0x60] sm:%s997] %v1032
                %v1034 = vld [vmem:[%s1006 + $0x68] sm:%s997]
                %1035 = vst [vmem:[%s1007 + $0x68] sm:%s997] %v1034
                %v1036 = vld [vmem:[%s1006 + $0x70] sm:%s997]
                %1037 = vst [vmem:[%s1007 + $0x70] sm:%s997] %v1036
                %v1038 = vld [vmem:[%s1006 + $0x78] sm:%s997]
                %1039 = vst [vmem:[%s1007 + $0x78] sm:%s997] %v1038
                %s1040 = sadd.s32 1, %s1005
                %p1041 = scmp.ge.s32.totalorder %s1040, %s998
                %s1042 = scalar_select %p1041, 0, %s1040
                %s1043 = smul.u32 %s1042, 128
                %s1044 = smul.u32 %s1042, 128
                %s1045 = scalar_lea.vmem %s977, %s1043 [#allocation2]
                %s1046 = scalar_lea.vmem %s988, %s1044
              $region69: #{tpu_custom_call.1} parent=63 // loop_footer
                %s1002 = sadd.s32 %s1000, 1
              $region70: #{tpu_custom_call.1} parent=63 // loop_footer_branch
                %999 = sbr.rel target = $region66
              $region71: #{tpu_custom_call.1} parent=63 // loop_exit
                _
              %s1047 = sshrl.u32 %s984, 4
              %s1048 = sand.u32 %s984, 15
              %s1049 = smul.u32 %s1047, 16
              %s1050 = smul.u32 8, %s1049
              %s1051 = scalar_lea.vmem %s977, %s1050 [#allocation2]
              %s1052 = smul.u32 8, %s1049
              %s1053 = scalar_lea.vmem %s988, %s1052
              // While loop
              $region72: #{tpu_custom_call.1} parent=63 // loop_pre_header
                _
              $region73: #{tpu_custom_call.1} parent=63 // loop_header
                %s1055 = sphi 0, %s1057
                %p1056 = scmp.ge.s32.totalorder %s1055, %s1048
                %s1060 = sphi 0, %s1067
                %s1061 = sphi %s1051, %s1070
                %s1062 = sphi %s1053, %s1071
              $region74: #{tpu_custom_call.1} parent=63 // loop_header_branch
                %1059 = sbr.rel (%p1056) target = $region78
              $region75: #{tpu_custom_call.1} parent=63 // loop_body
                %v1063 = vld [vmem:[%s1061] sm:%s997]
                %1064 = vst [vmem:[%s1062] sm:%s997] %v1063
                %s1065 = sadd.s32 1, %s1060
                %p1066 = scmp.ge.s32.totalorder %s1065, %s1048
                %s1067 = scalar_select %p1066, 0, %s1065
                %s1068 = smul.u32 %s1067, 8
                %s1069 = smul.u32 %s1067, 8
                %s1070 = scalar_lea.vmem %s1051, %s1068 [#allocation2]
                %s1071 = scalar_lea.vmem %s1053, %s1069
              $region76: #{tpu_custom_call.1} parent=63 // loop_footer
                %s1057 = sadd.s32 %s1055, 1
              $region77: #{tpu_custom_call.1} parent=63 // loop_footer_branch
                %1054 = sbr.rel target = $region73
              $region78: #{tpu_custom_call.1} parent=63 // loop_exit
                _
            $region64: #{tpu_custom_call.1} parent=55 // pred_fallthru
              _
          $region56: #{tpu_custom_call.1} parent=51 // pred_fallthru
            _
          %1150 = vnop
        $region52: #{tpu_custom_call.1} parent=47 // pred_fallthru
          _
      $region48: #{tpu_custom_call.1} parent=5 // pred_fallthru
        _
      %p1151 = scmp.le.s32.totalorder 2, %s13
      // Predicated region
      $region101: #{tpu_custom_call.1} parent=5 // pred_check
        %p1152 = pneg %p1151
      $region102: #{tpu_custom_call.1} parent=5 // pred_check_branch
        %1154 = sbr.rel (%p1152) target = $region104
      $region103: #{tpu_custom_call.1} parent=5 // pred_region
        %s1155 = ssub.s32 %s13, 2
        // Predicated region
        $region105: #{tpu_custom_call.1} parent=103 // pred_check
          %p1156 = pneg %p194
        $region106: #{tpu_custom_call.1} parent=103 // pred_check_branch
          %1158 = sbr.rel (%p1156) target = $region108
        $region107: #{tpu_custom_call.1} parent=103 // pred_region
          %s1159 = sand.u32 %s179, 1
          %s1160 = sand.u32 %s179, 1
          %s1161 = smul.addr %s1160, 128
          %s1162 = scalar_lea.vmem [#allocation2], %s1161
        $region108: #{tpu_custom_call.1} parent=103 // pred_fallthru
          _
      $region104: #{tpu_custom_call.1} parent=5 // pred_fallthru
        _
    $region6: #{tpu_custom_call.1} parent=1 // loop_footer
      %s17 = sadd.s32 1, %s13
    $region7: #{tpu_custom_call.1} parent=1 // loop_footer_branch
      %12 = sbr.rel target = $region3
    $region8: #{tpu_custom_call.1} parent=1 // loop_exit
      _

</llo_original>
